<compile_context>
chip_gen: v7x
topology: tpu7x:2x2x1
jax: 0.10.0
libtpu: 0.0.40
codegen_flags: <defaults>
</compile_context>

<pallas_src>
import functools

import jax
import jax.numpy as jnp
from jax.experimental import pallas as pl
from jax.experimental.pallas import tpu as pltpu


def kd_loss_kernel(s_ref, t_ref, lab_ref, out_ref, *,
                   alpha, temperature, batch_size, block_rows, mask_rows):
    s = s_ref[...].astype(jnp.float32)          # (TB, C) student logits (upcast in-kernel)
    t = t_ref[...].astype(jnp.float32)          # (TB, C) teacher logits
    labels = lab_ref[...]                       # (TB, 1) int32

    tb, c = s.shape
    T = float(temperature)
    inv_T = 1.0 / T
    inv_b = 1.0 / float(batch_size)             # global batch size, not block rows

    # ---- Student: single row-max shared by both softmaxes (max(s/T) == max(s)/T)
    m_s = jnp.max(s, axis=-1, keepdims=True)
    shifted_s = s - m_s
    exp_s = jnp.exp(shifted_s)                                   # EUP exp #1
    lse_s = jnp.log(jnp.sum(exp_s, axis=-1, keepdims=True))
    log_probs = shifted_s - lse_s                                # log_softmax(s)

    shifted_sT = shifted_s * inv_T
    exp_sT = jnp.exp(shifted_sT)                                 # EUP exp #2
    lse_sT = jnp.log(jnp.sum(exp_sT, axis=-1, keepdims=True))
    s_logp_T = shifted_sT - lse_sT                               # log_softmax(s/T)

    # ---- Teacher: one exp, reused for both probs and log-softmax
    m_t = jnp.max(t, axis=-1, keepdims=True)
    shifted_tT = (t - m_t) * inv_T
    exp_tT = jnp.exp(shifted_tT)                                 # EUP exp #3
    sum_tT = jnp.sum(exp_tT, axis=-1, keepdims=True)
    # exact per-row reciprocal: only (TB, 1) elements, keeps 1e-5 fidelity
    t_probs = exp_tT * pl.reciprocal(sum_tT)                     # softmax(t/T)
    t_logp_T = shifted_tT - jnp.log(sum_tT)                      # log_softmax(t/T)

    # ---- Fused per-element contribution; ONE full reduction per block
    class_ids = jax.lax.broadcasted_iota(jnp.int32, (tb, c), 1)
    ce_elem = jnp.where(class_ids == labels, -log_probs, 0.0)    # CE picks label column
    kl_elem = t_probs * (t_logp_T - s_logp_T)                    # KL(batchsum) element
    contrib = alpha * ce_elem + (1.0 - alpha) * (T * T) * kl_elem

    if mask_rows:
        row = (jax.lax.broadcasted_iota(jnp.int32, (tb, 1), 0)
               + pl.program_id(0) * block_rows)
        contrib = jnp.where(row < batch_size, contrib, 0.0)

    out_ref[0, 0] = jnp.sum(contrib) * inv_b


def _choose_block_rows(batch, classes):
    if batch <= 8:
        return batch
    # target ~1 MiB per f32 (TB, C) intermediate, capped at 512 rows
    tb = max(8, min(512, (1 << 20) // max(1, classes * 4)))
    tb = max(8, (tb // 8) * 8)
    tb = min(tb, batch)
    if tb != batch and tb % 8 != 0:
        tb = 8
    return tb


def kd_loss(student_logits, teacher_logits, labels, *,
            alpha=0.5, temperature=4.0, block_rows=None):
    B, C = student_logits.shape
    labels_2d = labels.reshape(B, 1).astype(jnp.int32)

    tb = block_rows if block_rows is not None else _choose_block_rows(B, C)
    tb = min(tb, B)
    num_blocks = pl.cdiv(B, tb)
    mask_rows = (B % tb) != 0

    kernel = functools.partial(
        kd_loss_kernel,
        alpha=float(alpha), temperature=float(temperature),
        batch_size=B, block_rows=tb, mask_rows=mask_rows)

    in_bytes = B * C * (student_logits.dtype.itemsize + teacher_logits.dtype.itemsize)
    cost = pl.CostEstimate(
        flops=12 * B * C,
        transcendentals=3 * B * C,
        bytes_accessed=in_bytes + 4 * B + 4 * num_blocks)

    # 2 inputs x 2 pipeline buffers + f32 in-kernel working set, with headroom;
    # capped so it is safe on v7x's smaller VMEM.
    block_in_bytes = tb * C * (student_logits.dtype.itemsize
                               + teacher_logits.dtype.itemsize)
    vmem_limit = int(min(48 * 1024 * 1024,
                         max(4 * 1024 * 1024,
                             2 * block_in_bytes + 8 * tb * C * 4 + (1 << 20))))

    partials = pl.pallas_call(
        kernel,
        out_shape=jax.ShapeDtypeStruct((num_blocks, 1), jnp.float32),
        grid=(num_blocks,),
        in_specs=[
            pl.BlockSpec((tb, C), lambda i: (i, 0)),     # student logits (native dtype)
            pl.BlockSpec((tb, C), lambda i: (i, 0)),     # teacher logits (native dtype)
            pl.BlockSpec((tb, 1), lambda i: (i, 0)),     # labels
        ],
        out_specs=pl.BlockSpec((1, 1), lambda i: (i, 0),
                               memory_space=pltpu.MemorySpace.SMEM),
        compiler_params=pltpu.CompilerParams(
            dimension_semantics=("parallel",),           # shards across TCs on v7x
            vmem_limit_bytes=vmem_limit),
        cost_estimate=cost,
    )(student_logits, teacher_logits, labels_2d)

    return jnp.sum(partials)


def kd_loss_ref(student_logits, teacher_logits, labels, *, alpha=0.5, temperature=4.0):
    # pure-JAX reference for sanity checking
    B, C = student_logits.shape
    s = student_logits.astype(jnp.float32)
    t = teacher_logits.astype(jnp.float32)
    log_probs = jax.nn.log_softmax(s, axis=1)
    ce = -jnp.mean(log_probs[jnp.arange(B), labels])
    t_probs = jax.nn.softmax(t / temperature, axis=1)
    s_logp = jax.nn.log_softmax(s / temperature, axis=1)
    kl = jnp.sum(t_probs * (jnp.log(t_probs) - s_logp)) / B
    kd = kl * temperature * temperature
    return alpha * ce + (1 - alpha) * kd


if __name__ == "__main__":
    key = jax.random.PRNGKey(0)

    # --- Test 1: f32, single block (small shapes) -------------------------
    k1, k2, k3, key = jax.random.split(key, 4)
    B, C = 16, 32
    student = jax.random.normal(k1, (B, C), dtype=jnp.float32)
    teacher = jax.random.normal(k2, (B, C), dtype=jnp.float32)
    labels = jax.random.randint(k3, (B,), 0, C, dtype=jnp.int32)
    out = jax.block_until_ready(kd_loss(student, teacher, labels))
    ref = kd_loss_ref(student, teacher, labels)
    assert jnp.allclose(out, ref, rtol=1e-5, atol=1e-5), (out, ref)

    # --- Test 2: bf16 inputs (native dtype on the wire), 3 full blocks ----
    k1, k2, k3, key = jax.random.split(key, 4)
    B, C = 24, 32
    student = jax.random.normal(k1, (B, C), dtype=jnp.float32).astype(jnp.bfloat16)
    teacher = jax.random.normal(k2, (B, C), dtype=jnp.float32).astype(jnp.bfloat16)
    labels = jax.random.randint(k3, (B,), 0, C, dtype=jnp.int32)
    out = jax.block_until_ready(
        kd_loss(student, teacher, labels, alpha=0.3, temperature=2.0, block_rows=8))
    ref = kd_loss_ref(student, teacher, labels, alpha=0.3, temperature=2.0)
    assert jnp.allclose(out, ref, rtol=1e-5, atol=1e-5), (out, ref)

    # --- Test 3: f32, partial last block (masking path) -------------------
    k1, k2, k3, key = jax.random.split(key, 4)
    B, C = 20, 32
    student = jax.random.normal(k1, (B, C), dtype=jnp.float32)
    teacher = jax.random.normal(k2, (B, C), dtype=jnp.float32)
    labels = jax.random.randint(k3, (B,), 0, C, dtype=jnp.int32)
    out = jax.block_until_ready(kd_loss(student, teacher, labels, block_rows=8))
    ref = kd_loss_ref(student, teacher, labels)
    assert jnp.allclose(out, ref, rtol=1e-5, atol=1e-5), (out, ref)

    print("KERNEL_OK")
</pallas_src>

<mosaic_0001>
module attributes {stable_mosaic.version = 11 : i64} {
  func.func @kd_loss_kernel(%arg0: i32, %arg1: memref<16x32xf32, #tpu.memory_space<vmem>>, %arg2: memref<16x32xf32, #tpu.memory_space<vmem>>, %arg3: memref<16x1xi32, #tpu.memory_space<vmem>>, %arg4: memref<1x1xf32, #tpu.memory_space<smem>>) attributes {dimension_semantics = [#tpu.dimension_semantics<parallel>], iteration_bounds = array<i64: 1>, scalar_prefetch = 0 : i64, scratch_operands = 0 : i64, tpu.core_type = #tpu.core_type<tc>, window_params = [{transform_indices = @transform_0, window_bounds = array<i64: 16, 32>}, {transform_indices = @transform_1, window_bounds = array<i64: 16, 32>}, {transform_indices = @transform_2, window_bounds = array<i64: 16, 1>}, {transform_indices = @transform_3, window_bounds = array<i64: 1, 1>}]} {
    %c0 = arith.constant 0 : index
    %c0_0 = arith.constant 0 : index
    %0 = vector.load %arg1[%c0, %c0_0] : memref<16x32xf32, #tpu.memory_space<vmem>>, vector<16x32xf32>
    %c0_1 = arith.constant 0 : index
    %c0_2 = arith.constant 0 : index
    %1 = vector.load %arg2[%c0_1, %c0_2] : memref<16x32xf32, #tpu.memory_space<vmem>>, vector<16x32xf32>
    %c0_3 = arith.constant 0 : index
    %c0_4 = arith.constant 0 : index
    %2 = vector.load %arg3[%c0_3, %c0_4] : memref<16x1xi32, #tpu.memory_space<vmem>>, vector<16x1xi32>
    %cst = arith.constant dense<0xFF800000> : vector<16xf32>
    %3 = vector.multi_reduction <maximumf>, %0, %cst [1] : vector<16x32xf32> to vector<16xf32>
    %4 = vector.shape_cast %3 : vector<16xf32> to vector<16x1xf32>
    %5 = vector.broadcast %4 : vector<16x1xf32> to vector<16x32xf32>
    %6 = arith.subf %0, %5 : vector<16x32xf32>
    %7 = math.exp %6 : vector<16x32xf32>
    %cst_5 = arith.constant dense<0.000000e+00> : vector<16xf32>
    %8 = vector.multi_reduction <add>, %7, %cst_5 [1] : vector<16x32xf32> to vector<16xf32>
    %9 = vector.shape_cast %8 : vector<16xf32> to vector<16x1xf32>
    %10 = math.log %9 : vector<16x1xf32>
    %11 = vector.broadcast %10 : vector<16x1xf32> to vector<16x32xf32>
    %12 = arith.subf %6, %11 : vector<16x32xf32>
    %cst_6 = arith.constant 2.500000e-01 : f32
    %13 = vector.broadcast %cst_6 : f32 to vector<16x32xf32>
    %14 = arith.mulf %6, %13 : vector<16x32xf32>
    %15 = math.exp %14 : vector<16x32xf32>
    %cst_7 = arith.constant dense<0.000000e+00> : vector<16xf32>
    %16 = vector.multi_reduction <add>, %15, %cst_7 [1] : vector<16x32xf32> to vector<16xf32>
    %17 = vector.shape_cast %16 : vector<16xf32> to vector<16x1xf32>
    %18 = math.log %17 : vector<16x1xf32>
    %19 = vector.broadcast %18 : vector<16x1xf32> to vector<16x32xf32>
    %20 = arith.subf %14, %19 : vector<16x32xf32>
    %cst_8 = arith.constant dense<0xFF800000> : vector<16xf32>
    %21 = vector.multi_reduction <maximumf>, %1, %cst_8 [1] : vector<16x32xf32> to vector<16xf32>
    %22 = vector.shape_cast %21 : vector<16xf32> to vector<16x1xf32>
    %23 = vector.broadcast %22 : vector<16x1xf32> to vector<16x32xf32>
    %24 = arith.subf %1, %23 : vector<16x32xf32>
    %cst_9 = arith.constant 2.500000e-01 : f32
    %25 = vector.broadcast %cst_9 : f32 to vector<16x32xf32>
    %26 = arith.mulf %24, %25 : vector<16x32xf32>
    %27 = math.exp %26 : vector<16x32xf32>
    %cst_10 = arith.constant dense<0.000000e+00> : vector<16xf32>
    %28 = vector.multi_reduction <add>, %27, %cst_10 [1] : vector<16x32xf32> to vector<16xf32>
    %29 = vector.shape_cast %28 : vector<16xf32> to vector<16x1xf32>
    %30 = tpu.reciprocal %29 : vector<16x1xf32> -> vector<16x1xf32>
    %31 = vector.broadcast %30 : vector<16x1xf32> to vector<16x32xf32>
    %32 = arith.mulf %27, %31 : vector<16x32xf32>
    %33 = math.log %29 : vector<16x1xf32>
    %34 = vector.broadcast %33 : vector<16x1xf32> to vector<16x32xf32>
    %35 = arith.subf %26, %34 : vector<16x32xf32>
    %36 = tpu.iota {dimensions = array<i32: 1>} : vector<16x32xi32>
    %37 = vector.broadcast %2 : vector<16x1xi32> to vector<16x32xi32>
    %38 = arith.cmpi eq, %36, %37 : vector<16x32xi32>
    %cst_11 = arith.constant 0.000000e+00 : f32
    %39 = vector.broadcast %cst_11 : f32 to vector<16x32xf32>
    %40 = arith.subf %39, %12 : vector<16x32xf32>
    %cst_12 = arith.constant 0.000000e+00 : f32
    %41 = vector.broadcast %cst_12 : f32 to vector<16x32xf32>
    %42 = arith.select %38, %40, %41 : vector<16x32xi1>, vector<16x32xf32>
    %43 = arith.subf %35, %20 : vector<16x32xf32>
    %44 = arith.mulf %32, %43 : vector<16x32xf32>
    %cst_13 = arith.constant 5.000000e-01 : f32
    %45 = vector.broadcast %cst_13 : f32 to vector<16x32xf32>
    %46 = arith.mulf %45, %42 : vector<16x32xf32>
    %cst_14 = arith.constant 8.000000e+00 : f32
    %47 = vector.broadcast %cst_14 : f32 to vector<16x32xf32>
    %48 = arith.mulf %47, %44 : vector<16x32xf32>
    %49 = arith.addf %46, %48 : vector<16x32xf32>
    %50 = vector.shape_cast %49 : vector<16x32xf32> to vector<1x16x32xf32>
    %cst_15 = arith.constant dense<0.000000e+00> : vector<1xf32>
    %51 = vector.multi_reduction <add>, %50, %cst_15 [1, 2] : vector<1x16x32xf32> to vector<1xf32>
    %52 = vector.shape_cast %51 : vector<1xf32> to vector<1x1x1xf32>
    %53 = vector.extract %52[0, 0, 0] : f32 from vector<1x1x1xf32>
    %cst_16 = arith.constant 6.250000e-02 : f32
    %54 = arith.mulf %53, %cst_16 : f32
    %c0_17 = arith.constant 0 : index
    %c0_18 = arith.constant 0 : index
    %55 = memref.load %arg4[%c0_17, %c0_18] : memref<1x1xf32, #tpu.memory_space<smem>>
    memref.store %54, %arg4[%c0_17, %c0_18] : memref<1x1xf32, #tpu.memory_space<smem>>
    return
  }
  func.func @transform_0(%arg0: i32) -> (i32, i32) {
    %c0_i32 = arith.constant 0 : i32
    %c0_i32_0 = arith.constant 0 : i32
    return %arg0, %c0_i32 : i32, i32
  }
  func.func @transform_1(%arg0: i32) -> (i32, i32) {
    %c0_i32 = arith.constant 0 : i32
    %c0_i32_0 = arith.constant 0 : i32
    return %arg0, %c0_i32 : i32, i32
  }
  func.func @transform_2(%arg0: i32) -> (i32, i32) {
    %c0_i32 = arith.constant 0 : i32
    %c0_i32_0 = arith.constant 0 : i32
    return %arg0, %c0_i32 : i32, i32
  }
  func.func @transform_3(%arg0: i32) -> (i32, i32) {
    %c0_i32 = arith.constant 0 : i32
    %c0_i32_0 = arith.constant 0 : i32
    return %arg0, %c0_i32 : i32, i32
  }
}

</mosaic_0001>

<llo_original>
// kernel: tpu_custom_call.1
$region0: #{tpu_custom_call.1}
  #allocation0 [shape = 'u32[]', space=smem, size = 0x4, offset = 0x4, fixed_abs, tag = 'smem constant byte address 0x4 - core index']
  #allocation1 [shape = 'u32[144,128]{1,0:T(1,128)}', space=vmem, size = 0x12000, scoped, tag = 'internal scratch']
  %s0 = inlined_call_operand.vmem [shape: f32[16,32], index: 0, kind: input, shape index: {}]
  %s1 = inlined_call_operand.hbm [shape: f32[16,32], index: 1, kind: input, shape index: {}]
  %s2 = inlined_call_operand.vmem [shape: s32[16,1], index: 2, kind: input, shape index: {}]
  %s3 = inlined_call_operand.hbm [shape: f32[1,1], index: 3, kind: output, shape index: {}]
  %s4 = sld [smem:[#allocation0]]
  $region26: #{tpu_custom_call.1} parent=0
    _
  %s6 = ssub.s32 1, %s4
  %s7 = scalar_select 0, %s6, %s4
  $region1: #{tpu_custom_call.1} parent=0
    #allocation2 [shape = 'u8[8192]{0}', space=vmem, size = 0x2000, scoped, tag = 'input window, operand 1, single buffered']
    #allocation3 [shape = 's32[1]{0}', space=sflag, size = 0x4, scoped, tag = 'scoped memory for tpu_custom_call.1']
    #allocation4 [shape = 's32[1]{0}', space=sflag, size = 0x4, scoped, tag = 'scoped memory for tpu_custom_call.1']
    #allocation5 [shape = 'u8[512]{0}', space=smem, size = 0x200, scoped, tag = 'output window, operand 0, single buffered']
    %8 = vsyncpa [#allocation3], 0
    %9 = vsyncpa [#allocation4], 0
    // Predicated region
    $region2: #{tpu_custom_call.1} parent=1 // pred_check
      _
    $region3: #{tpu_custom_call.1} parent=1 // pred_check_branch
      %11 = sbr.rel (0) target = $region5
    $region4: #{tpu_custom_call.1} parent=1 // pred_region
      _
    $region5: #{tpu_custom_call.1} parent=1 // pred_fallthru
      _
    // Predicated region
    $region6: #{tpu_custom_call.1} parent=1 // pred_check
      _
    $region7: #{tpu_custom_call.1} parent=1 // pred_check_branch
      %13 = sbr.rel (0) target = $region9
    $region8: #{tpu_custom_call.1} parent=1 // pred_region
      %s15 = ssub.s32 256, 256
      %16 = vsyncadd [#allocation3], %s15
      %s17 = sshll.u32 [#allocation2], 4
      %s18 = int_to_ptr.vmem [resolvable:$true] %s17
      %23 = dma.hbm_to_vmem [thread:$0]  %s1, 256, %s18, [#allocation3], 128, 128, 8
    $region9: #{tpu_custom_call.1} parent=1 // pred_fallthru
      _
    // Predicated region
    $region10: #{tpu_custom_call.1} parent=1 // pred_check
      _
    $region11: #{tpu_custom_call.1} parent=1 // pred_check_branch
      %25 = sbr.rel (0) target = $region13
    $region12: #{tpu_custom_call.1} parent=1 // pred_region
      _
    $region13: #{tpu_custom_call.1} parent=1 // pred_fallthru
      _
    // Predicated region
    $region14: #{tpu_custom_call.1} parent=1 // pred_check
      _
    $region15: #{tpu_custom_call.1} parent=1 // pred_check_branch
      %27 = sbr.rel (0) target = $region17
    $region16: #{tpu_custom_call.1} parent=1 // pred_region
      %28 = dma.done [#allocation3], 256
    $region17: #{tpu_custom_call.1} parent=1 // pred_fallthru
      _
    %v29 = vld [vmem:[%s0] sm:$0xff]
    %v30 = vld [vmem:[%s0 + $0x8] sm:$0xff]
    %v31 = vld [vmem:[#allocation2] sm:$0xff]
    %v32 = vld [vmem:[#allocation2 + $0x8] sm:$0xff]
    %v33 = vld [vmem:[%s2] sm:$0xff]
    %v34 = vld [vmem:[%s2 + $0x8] sm:$0xff]
    %vm35 = vcmask 261120
    %v36 = vsel %vm35, %v29, -inf
    %37 = vmax.xlane.f32.xlu0 %v36
    %v38 = vpop.xlane.xlu0 %37
    %v39 = vsel %vm35, %v30, -inf
    %40 = vmax.xlane.f32.xlu0 %v39
    %v41 = vpop.xlane.xlu0 %40
    %v42 = vsub.f32 %v29, %v38
    %v43 = vsub.f32 %v30, %v41
    %v44 = vmul.f32 %v42, 1.442695
    %v45 = vpow.pop %v44
    %v46 = vmul.f32 %v43, 1.442695
    %v47 = vpow.pop %v46
    %v48 = vsel %vm35, %v45, 0.0
    %49 = vadd.xlane.f32.xlu0 %v48
    %v50 = vpop.xlane.xlu0 %49
    %v51 = vsel %vm35, %v47, 0.0
    %52 = vadd.xlane.f32.xlu0 %v51
    %v53 = vpop.xlane.xlu0 %52
    %v54 = vlog2.pop %v50
    %v55 = vmul.f32 %v54, 0.6931472
    %v56 = vlog2.pop %v53
    %v57 = vmul.f32 %v56, 0.6931472
    %v58 = vsub.f32 %v42, %v55
    %v59 = vsub.f32 %v43, %v57
    %v60 = vmul.f32 %v42, 0.25
    %v61 = vmul.f32 %v43, 0.25
    %v62 = vmul.f32 %v60, 1.442695
    %v63 = vpow.pop %v62
    %v64 = vmul.f32 %v61, 1.442695
    %v65 = vpow.pop %v64
    %v66 = vsel %vm35, %v63, 0.0
    %67 = vadd.xlane.f32.xlu0 %v66
    %v68 = vpop.xlane.xlu0 %67
    %v69 = vsel %vm35, %v65, 0.0
    %70 = vadd.xlane.f32.xlu0 %v69
    %v71 = vpop.xlane.xlu0 %70
    %v72 = vlog2.pop %v68
    %v73 = vmul.f32 %v72, 0.6931472
    %v74 = vlog2.pop %v71
    %v75 = vmul.f32 %v74, 0.6931472
    %v76 = vsub.f32 %v60, %v73
    %v77 = vsub.f32 %v61, %v75
    %v78 = vsel %vm35, %v31, -inf
    %79 = vmax.xlane.f32.xlu0 %v78
    %v80 = vpop.xlane.xlu0 %79
    %v81 = vsel %vm35, %v32, -inf
    %82 = vmax.xlane.f32.xlu0 %v81
    %v83 = vpop.xlane.xlu0 %82
    %v84 = vsub.f32 %v31, %v80
    %v85 = vsub.f32 %v32, %v83
    %v86 = vmul.f32 %v84, 0.25
    %v87 = vmul.f32 %v85, 0.25
    %v88 = vmul.f32 %v86, 1.442695
    %v89 = vpow.pop %v88
    %v90 = vmul.f32 %v87, 1.442695
    %v91 = vpow.pop %v90
    %v92 = vsel %vm35, %v89, 0.0
    %93 = vadd.xlane.f32.xlu0 %v92
    %v94 = vpop.xlane.xlu0 %93
    %v95 = vsel %vm35, %v91, 0.0
    %96 = vadd.xlane.f32.xlu0 %v95
    %v97 = vpop.xlane.xlu0 %96
    %v98 = vrcp.pop %v94
    %v99 = vrcp.pop %v97
    %v100 = vmul.f32 %v89, %v98
    %v101 = vmul.f32 %v91, %v99
    %v102 = vlog2.pop %v94
    %v103 = vmul.f32 %v102, 0.6931472
    %v104 = vlog2.pop %v97
    %v105 = vmul.f32 %v104, 0.6931472
    %v106 = vsub.f32 %v86, %v103
    %v107 = vsub.f32 %v87, %v105
    %v108 = vlaneseq
    %v109 = vand.u32 %v108, 127
    %110 = vset.pattern.permute.xlu0 0
    %111 = vperm.xlu0 %110, %v33
    %v112 = vpop.permute.xlu0 %111
    %113 = vset.pattern.permute.xlu0 0
    %114 = vperm.xlu0 %113, %v34
    %v115 = vpop.permute.xlu0 %114
    %vm116 = vcmp.eq.s32.totalorder %v109, %v112
    %vm117 = vcmp.eq.s32.totalorder %v109, %v115
    %v118 = vsub.f32 0.0, %v58
    %v119 = vsub.f32 0.0, %v59
    %v120 = vsel %vm116, %v118, 0.0
    %v121 = vsel %vm117, %v119, 0.0
    %v122 = vsub.f32 %v106, %v76
    %v123 = vsub.f32 %v107, %v77
    %v124 = vmul.f32 %v100, %v122
    %v125 = vmul.f32 %v101, %v123
    %v126 = vmul.f32 %v120, 0.5
    %v127 = vmul.f32 %v121, 0.5
    %v128 = vmul.f32 %v124, 8.0
    %v129 = vmul.f32 %v125, 8.0
    %v130 = vadd.f32 %v126, %v128
    %v131 = vadd.f32 %v127, %v129
    %v132 = vsel %vm35, %v130, 0.0
    %v133 = vsel %vm35, %v131, 0.0
    %v134 = vadd.f32 %v132, %v133
    %135 = vadd.xlane.f32.xlu0 %v134
    %v136 = vpop.xlane.xlu0 %135
    %v137 = vrot.slane %v136, 4
    %v138 = vadd.f32 %v136, %v137
    %v139 = vrot.slane %v138, 2
    %v140 = vadd.f32 %v138, %v139
    %v141 = vrot.slane %v140, 1
    %v142 = vadd.f32 %v140, %v141
    %s143 = vtos %v142
    %s144 = smul.f32 %s143, 0.0625
    %s145 = scalar_lea.smem [#allocation5], 0
    %146 = sst [smem:[%s145]] %s144
    // Predicated region
    $region18: #{tpu_custom_call.1} parent=1 // pred_check
      _
    $region19: #{tpu_custom_call.1} parent=1 // pred_check_branch
      %148 = sbr.rel (0) target = $region21
    $region20: #{tpu_custom_call.1} parent=1 // pred_region
      %s150 = ssub.s32 16, 16
      %151 = vsyncadd [#allocation4], %s150
      %154 = dma.smem_to_hbm [#allocation5], 16, %s3, [#allocation4]
    $region21: #{tpu_custom_call.1} parent=1 // pred_fallthru
      _
    // Predicated region
    $region22: #{tpu_custom_call.1} parent=1 // pred_check
      _
    $region23: #{tpu_custom_call.1} parent=1 // pred_check_branch
      %156 = sbr.rel (0) target = $region25
    $region24: #{tpu_custom_call.1} parent=1 // pred_region
      %157 = dma.done [#allocation4], 16
    $region25: #{tpu_custom_call.1} parent=1 // pred_fallthru
      _
    %158 = sfence
    %159 = vsyncpa [#allocation3], 1
    %160 = vsyncpa [#allocation4], 1

</llo_original>
